<compile_context>
chip_gen: v6e
topology: v6e:2x2x1
jax: 0.10.0
libtpu: 0.0.40
codegen_flags: <defaults>
</compile_context>

<pallas_src>
import jax
import jax.numpy as jnp
from jax.experimental import pallas as pl
from jax.experimental.pallas import tpu as pltpu


def _round_up(x, m):
    return (x + m - 1) // m * m


def _device_kind():
    try:
        return jax.devices()[0].device_kind.lower()
    except Exception:
        return ""


def _num_tensorcores():
    # v7x has 2 TensorCores per chip; v5e/v6e (and older) have 1.
    return 2 if "v7" in _device_kind() else 1


def _eup_has_bf16():
    # v6e/v7x EUP/VPU have a bf16 path; v5e does not (bf16 intermediates
    # would only add convert ops there).
    kind = _device_kind()
    return ("v6" in kind) or ("v7" in kind)


# ----------------------------- Pallas kernel -------------------------------

def _make_lm_crit_kernel(exp_in_bf16):
    def kernel(h_ref, w_ref, tgt_ref, msk_ref, out_ref,
               acc_nll, acc_cnt, m_run, s_run, picked):
        """Fused LanguageModelCriterion tile with online logsumexp over vocab
        column tiles:
          logits_v = h @ W[:, v]          (bf16 MXU, f32 accumulate)
          picked  += logits_v[row, tgt]   (compare+select+lane-reduce)
          (m, s)   = online max/sum update
          at last v:   nll += (m + log s - picked) * mask ; cnt += mask
          at last (i, v): single lane-dense (1, 8, 128) store
                          (nll splat in sublane 0, count in sublane 1)."""
        i = pl.program_id(1)
        v = pl.program_id(2)
        n_i = pl.num_programs(1)
        n_v = pl.num_programs(2)

        @pl.when((i == 0) & (v == 0))
        def _():
            acc_nll[...] = jnp.zeros_like(acc_nll)
            acc_cnt[...] = jnp.zeros_like(acc_cnt)

        @pl.when(v == 0)
        def _():
            m_run[...] = jnp.full_like(m_run, -jnp.inf)
            s_run[...] = jnp.zeros_like(s_run)
            picked[...] = jnp.zeros_like(picked)

        logits = jnp.dot(h_ref[...], w_ref[...],
                         preferred_element_type=jnp.float32)      # (tm, tv) f32
        tm, tv = logits.shape

        # Target-logit gather FIRST: its iota/compare/select temporaries die
        # before the exp temporaries are created (caps peak vreg pressure).
        col = jax.lax.broadcasted_iota(jnp.int32, (tm, tv), 1)
        local_tgt = tgt_ref[...] - v * tv                         # (tm, 1)
        picked[...] += jnp.sum(jnp.where(col == local_tgt, logits, 0.0),
                               axis=-1, keepdims=True)

        # Online logsumexp across vocab tiles.
        m_prev = m_run[...]
        m_new = jnp.maximum(m_prev, jnp.max(logits, axis=-1, keepdims=True))
        centered = logits - m_new
        if exp_in_bf16:
            # ~2x EUP throughput (the binding unit at small H) on v6e/v7x,
            # and half the exp-temp vregs; sum still accumulates in f32.
            e = jnp.exp(centered.astype(jnp.bfloat16)).astype(jnp.float32)
        else:
            e = jnp.exp(centered)
        s_run[...] = (s_run[...] * jnp.exp(m_prev - m_new)
                      + jnp.sum(e, axis=-1, keepdims=True))
        m_run[...] = m_new

        @pl.when(v == n_v - 1)
        def _():
            lse = m_run[...] + jnp.log(s_run[...])                # (tm, 1)
            mask = msk_ref[...]                                   # (tm, 1)
            acc_nll[...] += (lse - picked[...]) * mask            # -logp * mask
            acc_cnt[...] += mask

        @pl.when((i == n_i - 1) & (v == n_v - 1))
        def _():
            nll_s = jnp.sum(acc_nll[...])
            cnt_s = jnp.sum(acc_cnt[...])
            row = jax.lax.broadcasted_iota(jnp.int32, out_ref.shape, 1)
            out_ref[...] = jnp.where(row == 0, nll_s,
                                     jnp.where(row == 1, cnt_s, 0.0))

    return kernel


def language_model_criterion_loss(h, w_vocab, targets, mask, *, tm=None, tv=None):
    """h: (M, H), w_vocab: (H, V), targets: (M,) int, mask: (M,) float.
    Returns scalar loss = sum(-log_softmax(h @ W)[i, tgt[i]] * mask[i]) / sum(mask)."""
    M, H = h.shape
    V = w_vocab.shape[1]

    # Row tile: multiple of 16 (bf16 packs [16,128] per vreg), capped at 128 so
    # the (tm, tv) epilogue intermediates fit the 64-vreg file (no spills).
    if tm is None:
        tm = min(128, _round_up(max(M, 16), 16))

    # Vocab tile: 128-lane W column slices + online logsumexp.  Keeps W
    # streamed instead of fully VMEM-resident (required for production vocab
    # sizes on v7x's 64 MiB VMEM) and caps epilogue vreg pressure.
    if tv is None:
        tv = 128 if V % 128 == 0 else V  # TODO(synk): pad+mask ragged vocab tails
    n_vt = V // tv

    n_tiles = -(-M // tm)
    # Leading "parallel" chunk axis only where it pays off (2 TCs on v7x).
    n_chunks = min(_num_tensorcores(), n_tiles)
    n_tiles = _round_up(n_tiles, n_chunks)
    tiles_per_chunk = n_tiles // n_chunks
    m_full = n_tiles * tm

    if m_full != M:
        pad = m_full - M
        h = jnp.pad(h, ((0, pad), (0, 0)))       # zero rows + zero mask -> no-op
        targets = jnp.pad(targets, (0, pad))
        mask = jnp.pad(mask, (0, pad))

    # bf16 MXU inputs (cast only if the caller didn't already provide bf16).
    h_bf = h if h.dtype == jnp.bfloat16 else h.astype(jnp.bfloat16)
    w_bf = w_vocab if w_vocab.dtype == jnp.bfloat16 else w_vocab.astype(jnp.bfloat16)
    tgt2 = targets.reshape(m_full, 1).astype(jnp.int32)
    msk2 = mask.reshape(m_full, 1).astype(jnp.float32)

    def row_block(c, i, v):
        return (c * tiles_per_chunk + i, 0)

    kernel = _make_lm_crit_kernel(_eup_has_bf16())

    out = pl.pallas_call(
        kernel,
        out_shape=jax.ShapeDtypeStruct((n_chunks, 8, 128), jnp.float32),
        grid_spec=pltpu.PrefetchScalarGridSpec(
            num_scalar_prefetch=0,
            grid=(n_chunks, tiles_per_chunk, n_vt),
            in_specs=[
                pl.BlockSpec((tm, H), row_block),                 # hidden rows (bf16)
                pl.BlockSpec((H, tv), lambda c, i, v: (0, v)),    # W column tile (bf16)
                pl.BlockSpec((tm, 1), row_block),                 # targets
                pl.BlockSpec((tm, 1), row_block),                 # masks
            ],
            out_specs=pl.BlockSpec((1, 8, 128), lambda c, i, v: (c, 0, 0)),
            scratch_shapes=[
                pltpu.VMEM((tm, 1), jnp.float32),   # per-row nll accumulator
                pltpu.VMEM((tm, 1), jnp.float32),   # per-row mask accumulator
                pltpu.VMEM((tm, 1), jnp.float32),   # running max (online lse)
                pltpu.VMEM((tm, 1), jnp.float32),   # running sum (online lse)
                pltpu.VMEM((tm, 1), jnp.float32),   # picked target logit
            ],
        ),
        compiler_params=pltpu.CompilerParams(
            dimension_semantics=("parallel", "arbitrary", "arbitrary"),
            vmem_limit_bytes=32 * 1024 * 1024),
    )(h_bf, w_bf, tgt2, msk2)

    nll_sum = jnp.sum(out[:, 0, 0])
    cnt_sum = jnp.sum(out[:, 1, 0])
    return nll_sum / cnt_sum   # NaN if sum(mask)==0 — same as the torch reference


# ------------------------- synthetic captioning model ----------------------

def make_params(key, d_fc, d_att, hidden, vocab):
    k = jax.random.split(key, 5)
    s = 0.1
    return {
        "W_fc": s * jax.random.normal(k[0], (d_fc, hidden), jnp.float32),
        "b_fc": jnp.zeros((hidden,), jnp.float32),
        "W_att": s * jax.random.normal(k[1], (d_att, hidden), jnp.float32),
        "E": s * jax.random.normal(k[2], (vocab, hidden), jnp.float32),
        "W_vocab": s * jax.random.normal(k[3], (hidden, vocab), jnp.float32),
    }


def model_hidden(params, fc_feats, att_feats, seq_in, att_masks):
    """Synthetic decoder producing per-step hidden states (B, T-1, H) in bf16
    (the cast fuses into the tanh epilogue — no standalone HBM cast pass)."""
    h0 = jnp.tanh(fc_feats @ params["W_fc"] + params["b_fc"])             # (B, H)
    denom = jnp.maximum(att_masks.sum(axis=1, keepdims=True), 1.0)
    att_pool = (att_feats * att_masks[..., None]).sum(axis=1) / denom     # (B, D_att)
    a = jnp.tanh(att_pool @ params["W_att"])                              # (B, H)
    emb = params["E"][seq_in]                                             # (B, T-1, H)
    h = jnp.tanh(emb + (h0 + a)[:, None, :])                              # (B, T-1, H)
    return h.astype(jnp.bfloat16)


# ------------------------------- LossWrapper --------------------------------

class LossWrapper:
    """JAX/Pallas port of captioning LossWrapper (opt.label_smoothing == 0)."""

    def __init__(self, key, d_fc=24, d_att=16, hidden=32, vocab=128):
        self.params = make_params(key, d_fc, d_att, hidden, vocab)
        # Persistent bf16 copy of the vocab projection (no per-step cast).
        self.w_vocab_bf16 = self.params["W_vocab"].astype(jnp.bfloat16)
        self.vocab = vocab

    def forward(self, fc_feats, att_feats, labels, masks, att_masks,
                gts=None, gt_indices=None,
                sc_flag=False, struc_flag=False, contrastive_flag=False, ids=None):
        # TODO(synk): struc_flag / sc_flag / contrastive_flag branches require
        # autoregressive sampling / beam search / CIDEr reward from the model;
        # only the default LM-criterion training path is implemented here.
        assert not (sc_flag or struc_flag or contrastive_flag)
        out = {}
        seq_in = labels[..., :-1]                          # (B, T-1) model input
        targets = labels[..., 1:]                          # (B, T-1)
        tmask = masks[..., 1:].astype(jnp.float32)         # (B, T-1)

        h = model_hidden(self.params, fc_feats, att_feats, seq_in, att_masks)
        B, Tm1, H = h.shape
        loss = language_model_criterion_loss(
            h.reshape(B * Tm1, H),
            self.w_vocab_bf16,
            targets.reshape(B * Tm1),
            tmask.reshape(B * Tm1),
        )
        out["loss"] = loss
        return out


# ------------------------------- reference ---------------------------------

def reference_loss(params, fc_feats, att_feats, labels, masks, att_masks):
    seq_in = labels[..., :-1]
    targets = labels[..., 1:]
    tmask = masks[..., 1:].astype(jnp.float32)
    h = model_hidden(params, fc_feats, att_feats, seq_in, att_masks)      # bf16
    # Match the kernel's MXU precision: bf16 inputs, f32 accumulation;
    # softmax epilogue fully in f32.
    logits = jnp.dot(h, params["W_vocab"].astype(jnp.bfloat16),
                     preferred_element_type=jnp.float32)
    logp = jax.nn.log_softmax(logits, axis=-1)
    picked = jnp.take_along_axis(logp, targets[..., None], axis=-1)[..., 0]
    return jnp.sum(-picked * tmask) / jnp.sum(tmask)


# --------------------------------- main -------------------------------------

if __name__ == "__main__":
    key = jax.random.PRNGKey(0)
    k_param, k_fc, k_att, k_lab, k_len = jax.random.split(key, 5)

    B, T, N_att, D_fc, D_att, H, V = 4, 9, 5, 24, 16, 32, 128

    wrapper = LossWrapper(k_param, d_fc=D_fc, d_att=D_att, hidden=H, vocab=V)

    fc_feats = jax.random.normal(k_fc, (B, D_fc), jnp.float32)
    att_feats = jax.random.normal(k_att, (B, N_att, D_att), jnp.float32)
    labels = jax.random.randint(k_lab, (B, T), 1, V, dtype=jnp.int32)
    labels = labels.at[:, 0].set(0)                       # BOS token
    lengths = jax.random.randint(k_len, (B,), 4, T, dtype=jnp.int32)
    masks = (jnp.arange(T)[None, :] < lengths[:, None]).astype(jnp.float32)
    att_masks = jnp.ones((B, N_att), jnp.float32)

    out = wrapper.forward(fc_feats, att_feats, labels, masks, att_masks,
                          sc_flag=False, struc_flag=False, contrastive_flag=False)
    loss = jax.block_until_ready(out["loss"])

    ref = jax.block_until_ready(
        reference_loss(wrapper.params, fc_feats, att_feats, labels, masks, att_masks))
    # Tolerance accounts for the bf16 exp path on v6e/v7x (f32-accumulated).
    assert jnp.allclose(loss, ref, rtol=1e-2, atol=1e-3), (loss, ref)

    print("KERNEL_OK")
</pallas_src>

<mosaic_0001>
module attributes {stable_mosaic.version = 11 : i64} {
  func.func @kernel(%arg0: i32, %arg1: i32, %arg2: i32, %arg3: memref<32x32xbf16, #tpu.memory_space<vmem>>, %arg4: memref<32x128xbf16, #tpu.memory_space<vmem>>, %arg5: memref<32x1xi32, #tpu.memory_space<vmem>>, %arg6: memref<32x1xf32, #tpu.memory_space<vmem>>, %arg7: memref<1x8x128xf32, #tpu.memory_space<vmem>>, %arg8: memref<32x1xf32, #tpu.memory_space<vmem>>, %arg9: memref<32x1xf32, #tpu.memory_space<vmem>>, %arg10: memref<32x1xf32, #tpu.memory_space<vmem>>, %arg11: memref<32x1xf32, #tpu.memory_space<vmem>>, %arg12: memref<32x1xf32, #tpu.memory_space<vmem>>) attributes {dimension_semantics = [#tpu.dimension_semantics<parallel>, #tpu.dimension_semantics<arbitrary>, #tpu.dimension_semantics<arbitrary>], iteration_bounds = array<i64: 1, 1, 1>, scalar_prefetch = 0 : i64, scratch_operands = 5 : i64, tpu.core_type = #tpu.core_type<tc>, window_params = [{transform_indices = @transform_0, window_bounds = array<i64: 32, 32>}, {transform_indices = @transform_1, window_bounds = array<i64: 32, 128>}, {transform_indices = @transform_2, window_bounds = array<i64: 32, 1>}, {transform_indices = @transform_3, window_bounds = array<i64: 32, 1>}, {transform_indices = @transform_4, window_bounds = array<i64: 1, 8, 128>}]} {
    %c0_i32 = arith.constant 0 : i32
    %0 = arith.cmpi eq, %arg1, %c0_i32 : i32
    %c0_i32_0 = arith.constant 0 : i32
    %1 = arith.cmpi eq, %arg2, %c0_i32_0 : i32
    %2 = arith.andi %0, %1 : i1
    %3 = arith.extui %2 : i1 to i32
    %c0_i32_1 = arith.constant 0 : i32
    %4 = arith.cmpi ne, %3, %c0_i32_1 : i32
    scf.if %4 {
      %cst_30 = arith.constant 0.000000e+00 : f32
      %49 = vector.broadcast %cst_30 : f32 to vector<32x1xf32>
      %c0_31 = arith.constant 0 : index
      %c0_32 = arith.constant 0 : index
      %50 = vector.load %arg8[%c0_31, %c0_32] : memref<32x1xf32, #tpu.memory_space<vmem>>, vector<32x1xf32>
      tpu.vector_store %arg8[%c0_31, %c0_32], %49 {strides = array<i32>} : memref<32x1xf32, #tpu.memory_space<vmem>>, vector<32x1xf32>,
      %cst_33 = arith.constant 0.000000e+00 : f32
      %51 = vector.broadcast %cst_33 : f32 to vector<32x1xf32>
      %c0_34 = arith.constant 0 : index
      %c0_35 = arith.constant 0 : index
      %52 = vector.load %arg9[%c0_34, %c0_35] : memref<32x1xf32, #tpu.memory_space<vmem>>, vector<32x1xf32>
      tpu.vector_store %arg9[%c0_34, %c0_35], %51 {strides = array<i32>} : memref<32x1xf32, #tpu.memory_space<vmem>>, vector<32x1xf32>,
    } else {
    }
    %c0_i32_2 = arith.constant 0 : i32
    %5 = arith.cmpi eq, %arg2, %c0_i32_2 : i32
    %6 = arith.extui %5 : i1 to i32
    %c0_i32_3 = arith.constant 0 : i32
    %7 = arith.cmpi ne, %6, %c0_i32_3 : i32
    scf.if %7 {
      %cst_30 = arith.constant 0xFF800000 : f32
      %49 = vector.broadcast %cst_30 : f32 to vector<32x1xf32>
      %c0_31 = arith.constant 0 : index
      %c0_32 = arith.constant 0 : index
      %50 = vector.load %arg10[%c0_31, %c0_32] : memref<32x1xf32, #tpu.memory_space<vmem>>, vector<32x1xf32>
      tpu.vector_store %arg10[%c0_31, %c0_32], %49 {strides = array<i32>} : memref<32x1xf32, #tpu.memory_space<vmem>>, vector<32x1xf32>,
      %cst_33 = arith.constant 0.000000e+00 : f32
      %51 = vector.broadcast %cst_33 : f32 to vector<32x1xf32>
      %c0_34 = arith.constant 0 : index
      %c0_35 = arith.constant 0 : index
      %52 = vector.load %arg11[%c0_34, %c0_35] : memref<32x1xf32, #tpu.memory_space<vmem>>, vector<32x1xf32>
      tpu.vector_store %arg11[%c0_34, %c0_35], %51 {strides = array<i32>} : memref<32x1xf32, #tpu.memory_space<vmem>>, vector<32x1xf32>,
      %cst_36 = arith.constant 0.000000e+00 : f32
      %53 = vector.broadcast %cst_36 : f32 to vector<32x1xf32>
      %c0_37 = arith.constant 0 : index
      %c0_38 = arith.constant 0 : index
      %54 = vector.load %arg12[%c0_37, %c0_38] : memref<32x1xf32, #tpu.memory_space<vmem>>, vector<32x1xf32>
      tpu.vector_store %arg12[%c0_37, %c0_38], %53 {strides = array<i32>} : memref<32x1xf32, #tpu.memory_space<vmem>>, vector<32x1xf32>,
    } else {
    }
    %c0 = arith.constant 0 : index
    %c0_4 = arith.constant 0 : index
    %8 = vector.load %arg3[%c0, %c0_4] : memref<32x32xbf16, #tpu.memory_space<vmem>>, vector<32x32xbf16>
    %c0_5 = arith.constant 0 : index
    %c0_6 = arith.constant 0 : index
    %9 = vector.load %arg4[%c0_5, %c0_6] : memref<32x128xbf16, #tpu.memory_space<vmem>>, vector<32x128xbf16>
    %cst = arith.constant dense<0.000000e+00> : vector<32x128xf32>
    %10 = tpu.matmul %8, %9, %cst {dimension_numbers = #tpu.dot_dimension_numbers<[1], [0], [0], [1], [0, 0, 1, 1], [], []>} : vector<32x32xbf16>, vector<32x128xbf16>, vector<32x128xf32> -> vector<32x128xf32>
    %11 = tpu.iota {dimensions = array<i32: 1>} : vector<32x128xi32>
    %c0_7 = arith.constant 0 : index
    %c0_8 = arith.constant 0 : index
    %12 = vector.load %arg5[%c0_7, %c0_8] : memref<32x1xi32, #tpu.memory_space<vmem>>, vector<32x1xi32>
    %c128_i32 = arith.constant 128 : i32
    %13 = arith.muli %arg2, %c128_i32 : i32
    %14 = vector.broadcast %13 : i32 to vector<32x1xi32>
    %15 = arith.subi %12, %14 : vector<32x1xi32>
    %c0_9 = arith.constant 0 : index
    %c0_10 = arith.constant 0 : index
    %16 = vector.load %arg12[%c0_9, %c0_10] : memref<32x1xf32, #tpu.memory_space<vmem>>, vector<32x1xf32>
    %17 = vector.broadcast %15 : vector<32x1xi32> to vector<32x128xi32>
    %18 = arith.cmpi eq, %11, %17 : vector<32x128xi32>
    %cst_11 = arith.constant 0.000000e+00 : f32
    %19 = vector.broadcast %cst_11 : f32 to vector<32x128xf32>
    %20 = arith.select %18, %10, %19 : vector<32x128xi1>, vector<32x128xf32>
    %cst_12 = arith.constant dense<0.000000e+00> : vector<32xf32>
    %21 = vector.multi_reduction <add>, %20, %cst_12 [1] : vector<32x128xf32> to vector<32xf32>
    %22 = vector.shape_cast %21 : vector<32xf32> to vector<32x1xf32>
    %23 = arith.addf %16, %22 : vector<32x1xf32>
    %c0_13 = arith.constant 0 : index
    %c0_14 = arith.constant 0 : index
    %24 = vector.load %arg12[%c0_13, %c0_14] : memref<32x1xf32, #tpu.memory_space<vmem>>, vector<32x1xf32>
    tpu.vector_store %arg12[%c0_13, %c0_14], %23 {strides = array<i32>} : memref<32x1xf32, #tpu.memory_space<vmem>>, vector<32x1xf32>,
    %c0_15 = arith.constant 0 : index
    %c0_16 = arith.constant 0 : index
    %25 = vector.load %arg10[%c0_15, %c0_16] : memref<32x1xf32, #tpu.memory_space<vmem>>, vector<32x1xf32>
    %cst_17 = arith.constant dense<0xFF800000> : vector<32xf32>
    %26 = vector.multi_reduction <maximumf>, %10, %cst_17 [1] : vector<32x128xf32> to vector<32xf32>
    %27 = vector.shape_cast %26 : vector<32xf32> to vector<32x1xf32>
    %28 = arith.maximumf %25, %27 : vector<32x1xf32>
    %29 = vector.broadcast %28 : vector<32x1xf32> to vector<32x128xf32>
    %30 = arith.subf %10, %29 : vector<32x128xf32>
    %31 = math.exp %30 : vector<32x128xf32>
    %c0_18 = arith.constant 0 : index
    %c0_19 = arith.constant 0 : index
    %32 = vector.load %arg11[%c0_18, %c0_19] : memref<32x1xf32, #tpu.memory_space<vmem>>, vector<32x1xf32>
    %33 = arith.subf %25, %28 : vector<32x1xf32>
    %34 = math.exp %33 : vector<32x1xf32>
    %35 = arith.mulf %32, %34 : vector<32x1xf32>
    %cst_20 = arith.constant dense<0.000000e+00> : vector<32xf32>
    %36 = vector.multi_reduction <add>, %31, %cst_20 [1] : vector<32x128xf32> to vector<32xf32>
    %37 = vector.shape_cast %36 : vector<32xf32> to vector<32x1xf32>
    %38 = arith.addf %35, %37 : vector<32x1xf32>
    %c0_21 = arith.constant 0 : index
    %c0_22 = arith.constant 0 : index
    %39 = vector.load %arg11[%c0_21, %c0_22] : memref<32x1xf32, #tpu.memory_space<vmem>>, vector<32x1xf32>
    tpu.vector_store %arg11[%c0_21, %c0_22], %38 {strides = array<i32>} : memref<32x1xf32, #tpu.memory_space<vmem>>, vector<32x1xf32>,
    %c0_23 = arith.constant 0 : index
    %c0_24 = arith.constant 0 : index
    %40 = vector.load %arg10[%c0_23, %c0_24] : memref<32x1xf32, #tpu.memory_space<vmem>>, vector<32x1xf32>
    tpu.vector_store %arg10[%c0_23, %c0_24], %28 {strides = array<i32>} : memref<32x1xf32, #tpu.memory_space<vmem>>, vector<32x1xf32>,
    %c0_i32_25 = arith.constant 0 : i32
    %41 = arith.cmpi eq, %arg2, %c0_i32_25 : i32
    %42 = arith.extui %41 : i1 to i32
    %c0_i32_26 = arith.constant 0 : i32
    %43 = arith.cmpi ne, %42, %c0_i32_26 : i32
    scf.if %43 {
      %c0_30 = arith.constant 0 : index
      %c0_31 = arith.constant 0 : index
      %49 = vector.load %arg10[%c0_30, %c0_31] : memref<32x1xf32, #tpu.memory_space<vmem>>, vector<32x1xf32>
      %c0_32 = arith.constant 0 : index
      %c0_33 = arith.constant 0 : index
      %50 = vector.load %arg11[%c0_32, %c0_33] : memref<32x1xf32, #tpu.memory_space<vmem>>, vector<32x1xf32>
      %51 = math.log %50 : vector<32x1xf32>
      %52 = arith.addf %49, %51 : vector<32x1xf32>
      %c0_34 = arith.constant 0 : index
      %c0_35 = arith.constant 0 : index
      %53 = vector.load %arg6[%c0_34, %c0_35] : memref<32x1xf32, #tpu.memory_space<vmem>>, vector<32x1xf32>
      %c0_36 = arith.constant 0 : index
      %c0_37 = arith.constant 0 : index
      %54 = vector.load %arg8[%c0_36, %c0_37] : memref<32x1xf32, #tpu.memory_space<vmem>>, vector<32x1xf32>
      %c0_38 = arith.constant 0 : index
      %c0_39 = arith.constant 0 : index
      %55 = vector.load %arg12[%c0_38, %c0_39] : memref<32x1xf32, #tpu.memory_space<vmem>>, vector<32x1xf32>
      %56 = arith.subf %52, %55 : vector<32x1xf32>
      %57 = arith.mulf %56, %53 : vector<32x1xf32>
      %58 = arith.addf %54, %57 : vector<32x1xf32>
      %c0_40 = arith.constant 0 : index
      %c0_41 = arith.constant 0 : index
      %59 = vector.load %arg8[%c0_40, %c0_41] : memref<32x1xf32, #tpu.memory_space<vmem>>, vector<32x1xf32>
      tpu.vector_store %arg8[%c0_40, %c0_41], %58 {strides = array<i32>} : memref<32x1xf32, #tpu.memory_space<vmem>>, vector<32x1xf32>,
      %c0_42 = arith.constant 0 : index
      %c0_43 = arith.constant 0 : index
      %60 = vector.load %arg9[%c0_42, %c0_43] : memref<32x1xf32, #tpu.memory_space<vmem>>, vector<32x1xf32>
      %61 = arith.addf %60, %53 : vector<32x1xf32>
      %c0_44 = arith.constant 0 : index
      %c0_45 = arith.constant 0 : index
      %62 = vector.load %arg9[%c0_44, %c0_45] : memref<32x1xf32, #tpu.memory_space<vmem>>, vector<32x1xf32>
      tpu.vector_store %arg9[%c0_44, %c0_45], %61 {strides = array<i32>} : memref<32x1xf32, #tpu.memory_space<vmem>>, vector<32x1xf32>,
    } else {
    }
    %c0_i32_27 = arith.constant 0 : i32
    %44 = arith.cmpi eq, %arg1, %c0_i32_27 : i32
    %c0_i32_28 = arith.constant 0 : i32
    %45 = arith.cmpi eq, %arg2, %c0_i32_28 : i32
    %46 = arith.andi %44, %45 : i1
    %47 = arith.extui %46 : i1 to i32
    %c0_i32_29 = arith.constant 0 : i32
    %48 = arith.cmpi ne, %47, %c0_i32_29 : i32
    scf.if %48 {
      %c0_30 = arith.constant 0 : index
      %c0_31 = arith.constant 0 : index
      %49 = vector.load %arg8[%c0_30, %c0_31] : memref<32x1xf32, #tpu.memory_space<vmem>>, vector<32x1xf32>
      %50 = vector.shape_cast %49 : vector<32x1xf32> to vector<1x32x1xf32>
      %cst_32 = arith.constant dense<0.000000e+00> : vector<1xf32>
      %51 = vector.multi_reduction <add>, %50, %cst_32 [1, 2] : vector<1x32x1xf32> to vector<1xf32>
      %52 = vector.shape_cast %51 : vector<1xf32> to vector<1x1x1xf32>
      %53 = vector.extract %52[0, 0, 0] : f32 from vector<1x1x1xf32>
      %c0_33 = arith.constant 0 : index
      %c0_34 = arith.constant 0 : index
      %54 = vector.load %arg9[%c0_33, %c0_34] : memref<32x1xf32, #tpu.memory_space<vmem>>, vector<32x1xf32>
      %55 = vector.shape_cast %54 : vector<32x1xf32> to vector<1x32x1xf32>
      %cst_35 = arith.constant dense<0.000000e+00> : vector<1xf32>
      %56 = vector.multi_reduction <add>, %55, %cst_35 [1, 2] : vector<1x32x1xf32> to vector<1xf32>
      %57 = vector.shape_cast %56 : vector<1xf32> to vector<1x1x1xf32>
      %58 = vector.extract %57[0, 0, 0] : f32 from vector<1x1x1xf32>
      %59 = tpu.iota {dimensions = array<i32: 1>} : vector<1x8x128xi32>
      %c0_i32_36 = arith.constant 0 : i32
      %60 = vector.broadcast %c0_i32_36 : i32 to vector<1x8x128xi32>
      %61 = arith.cmpi eq, %59, %60 : vector<1x8x128xi32>
      %c1_i32 = arith.constant 1 : i32
      %62 = vector.broadcast %c1_i32 : i32 to vector<1x8x128xi32>
      %63 = arith.cmpi eq, %59, %62 : vector<1x8x128xi32>
      %cst_37 = arith.constant 0.000000e+00 : f32
      %64 = vector.broadcast %58 : f32 to vector<1x8x128xf32>
      %65 = vector.broadcast %cst_37 : f32 to vector<1x8x128xf32>
      %66 = arith.select %63, %64, %65 : vector<1x8x128xi1>, vector<1x8x128xf32>
      %67 = vector.broadcast %53 : f32 to vector<1x8x128xf32>
      %68 = arith.select %61, %67, %66 : vector<1x8x128xi1>, vector<1x8x128xf32>
      %c0_38 = arith.constant 0 : index
      %c0_39 = arith.constant 0 : index
      %c0_40 = arith.constant 0 : index
      %69 = vector.load %arg7[%c0_38, %c0_39, %c0_40] : memref<1x8x128xf32, #tpu.memory_space<vmem>>, vector<1x8x128xf32>
      tpu.vector_store %arg7[%c0_38, %c0_39, %c0_40], %68 {strides = array<i32>} : memref<1x8x128xf32, #tpu.memory_space<vmem>>, vector<1x8x128xf32>,
    } else {
    }
    return
  }
  func.func @transform_0(%arg0: i32, %arg1: i32, %arg2: i32) -> (i32, i32) {
    %c1_i32 = arith.constant 1 : i32
    %0 = arith.muli %arg0, %c1_i32 : i32
    %1 = arith.addi %0, %arg1 : i32
    %c0_i32 = arith.constant 0 : i32
    %c0_i32_0 = arith.constant 0 : i32
    return %1, %c0_i32 : i32, i32
  }
  func.func @transform_1(%arg0: i32, %arg1: i32, %arg2: i32) -> (i32, i32) {
    %c0_i32 = arith.constant 0 : i32
    %c0_i32_0 = arith.constant 0 : i32
    return %c0_i32, %arg2 : i32, i32
  }
  func.func @transform_2(%arg0: i32, %arg1: i32, %arg2: i32) -> (i32, i32) {
    %c1_i32 = arith.constant 1 : i32
    %0 = arith.muli %arg0, %c1_i32 : i32
    %1 = arith.addi %0, %arg1 : i32
    %c0_i32 = arith.constant 0 : i32
    %c0_i32_0 = arith.constant 0 : i32
    return %1, %c0_i32 : i32, i32
  }
  func.func @transform_3(%arg0: i32, %arg1: i32, %arg2: i32) -> (i32, i32) {
    %c1_i32 = arith.constant 1 : i32
    %0 = arith.muli %arg0, %c1_i32 : i32
    %1 = arith.addi %0, %arg1 : i32
    %c0_i32 = arith.constant 0 : i32
    %c0_i32_0 = arith.constant 0 : i32
    return %1, %c0_i32 : i32, i32
  }
  func.func @transform_4(%arg0: i32, %arg1: i32, %arg2: i32) -> (i32, i32, i32) {
    %c0_i32 = arith.constant 0 : i32
    %c0_i32_0 = arith.constant 0 : i32
    %c0_i32_1 = arith.constant 0 : i32
    return %arg0, %c0_i32, %c0_i32_0 : i32, i32, i32
  }
}

</mosaic_0001>

<llo_original>
// kernel: tpu_custom_call.1
$region0: #{tpu_custom_call.1}
  #allocation0 [shape = 'u32[]', space=smem, size = 0x4, offset = 0x4, fixed_abs, tag = 'smem constant byte address 0x4 - core index']
  #allocation1 [shape = 'u32[144,128]{1,0:T(1,128)}', space=vmem, size = 0x12000, scoped, tag = 'internal scratch']
  #allocation2 [shape = 'f32[32,1]{1,0:T(8,128)}', space=vmem, size = 0x4000, scoped, tag = 'scratch operand']
  #allocation3 [shape = 'f32[32,1]{1,0:T(8,128)}', space=vmem, size = 0x4000, scoped, tag = 'scratch operand']
  #allocation4 [shape = 'f32[32,1]{1,0:T(8,128)}', space=vmem, size = 0x4000, scoped, tag = 'scratch operand']
  #allocation5 [shape = 'f32[32,1]{1,0:T(8,128)}', space=vmem, size = 0x4000, scoped, tag = 'scratch operand']
  #allocation6 [shape = 'f32[32,1]{1,0:T(8,128)}', space=vmem, size = 0x4000, scoped, tag = 'scratch operand']
  %s0 = inlined_call_operand.vmem [shape: bf16[32,32], index: 0, kind: input, shape index: {}]
  %s1 = inlined_call_operand.vmem [shape: bf16[32,128], index: 1, kind: input, shape index: {}]
  %s2 = inlined_call_operand.vmem [shape: s32[32,1], index: 2, kind: input, shape index: {}]
  %s3 = inlined_call_operand.vmem [shape: f32[32,1], index: 3, kind: input, shape index: {}]
  %s4 = inlined_call_operand.hbm [shape: f32[1,8,128], index: 4, kind: output, shape index: {}]
  %s5 = sld [smem:[#allocation0]]
  $region42: #{tpu_custom_call.1} parent=0
    _
  %s7 = ssub.s32 1, %s5
  %s8 = scalar_select 0, %s7, %s5
  $region1: #{tpu_custom_call.1} parent=0
    #allocation7 [shape = 'u8[4096]{0}', space=vmem, size = 0x1000, scoped, tag = 'output window, operand 0, single buffered']
    #allocation8 [shape = 's32[1]{0}', space=sflag, size = 0x4, scoped, tag = 'scoped memory for tpu_custom_call.1']
    %9 = vsyncpa [#allocation8], 0
    // Predicated region
    $region2: #{tpu_custom_call.1} parent=1 // pred_check
      _
    $region3: #{tpu_custom_call.1} parent=1 // pred_check_branch
      %11 = sbr.rel (0) target = $region5
    $region4: #{tpu_custom_call.1} parent=1 // pred_region
      %s12 = sadd.s32 0, 0
      %s13 = smul.u32 4, %s12
      %p14 = scmp.lt.s32.totalorder %s13, 3
      %s15 = scalar_select %p14, %s13, 3
      %s16 = smul.addr %s15, 4
      %s17 = scalar_lea.vmem %s0, %s16
      %s18 = sadd.s32 0, 0
      %s19 = smul.u32 4, %s18
    $region5: #{tpu_custom_call.1} parent=1 // pred_fallthru
      _
    // Predicated region
    $region6: #{tpu_custom_call.1} parent=1 // pred_check
      _
    $region7: #{tpu_custom_call.1} parent=1 // pred_check_branch
      %21 = sbr.rel (0) target = $region9
    $region8: #{tpu_custom_call.1} parent=1 // pred_region
      _
    $region9: #{tpu_custom_call.1} parent=1 // pred_fallthru
      _
    // Predicated region
    $region10: #{tpu_custom_call.1} parent=1 // pred_check
      _
    $region11: #{tpu_custom_call.1} parent=1 // pred_check_branch
      %23 = sbr.rel (0) target = $region13
    $region12: #{tpu_custom_call.1} parent=1 // pred_region
      %s24 = sadd.s32 0, 0
      %s25 = smul.u32 4, %s24
      %p26 = scmp.lt.s32.totalorder %s25, 3
      %s27 = scalar_select %p26, %s25, 3
      %s28 = smul.addr %s27, 8
      %s29 = scalar_lea.vmem %s2, %s28
      %s30 = sadd.s32 0, 0
      %s31 = smul.u32 4, %s30
    $region13: #{tpu_custom_call.1} parent=1 // pred_fallthru
      _
    // Predicated region
    $region14: #{tpu_custom_call.1} parent=1 // pred_check
      _
    $region15: #{tpu_custom_call.1} parent=1 // pred_check_branch
      %33 = sbr.rel (0) target = $region17
    $region16: #{tpu_custom_call.1} parent=1 // pred_region
      %s34 = sadd.s32 0, 0
      %s35 = smul.u32 4, %s34
      %p36 = scmp.lt.s32.totalorder %s35, 3
      %s37 = scalar_select %p36, %s35, 3
      %s38 = smul.addr %s37, 8
      %s39 = scalar_lea.vmem %s3, %s38
      %s40 = sadd.s32 0, 0
      %s41 = smul.u32 4, %s40
    $region17: #{tpu_custom_call.1} parent=1 // pred_fallthru
      _
    %s42 = sadd.s32 0, 0
    %s43 = smul.u32 4, %s42
    %p44 = scmp.lt.s32.totalorder %s43, 3
    %s45 = scalar_select %p44, %s43, 3
    %s46 = smul.addr %s45, 4
    %s47 = scalar_lea.vmem %s0, %s46
    %s48 = sadd.s32 0, 0
    %s49 = smul.u32 4, %s48
    %p50 = scmp.lt.s32.totalorder %s49, 3
    %s51 = scalar_select %p50, %s49, 3
    %s52 = smul.addr %s51, 8
    %s53 = scalar_lea.vmem %s2, %s52
    %s54 = sadd.s32 0, 0
    %s55 = smul.u32 4, %s54
    %p56 = scmp.lt.s32.totalorder %s55, 3
    %s57 = scalar_select %p56, %s55, 3
    %s58 = smul.addr %s57, 8
    %s59 = scalar_lea.vmem %s3, %s58
    %s60 = sadd.s32 0, 0
    %s61 = smul.u32 4, %s60
    %p62 = scmp.lt.s32.totalorder %s61, 3
    %s63 = scalar_select %p62, %s61, 3
    %s64 = smul.addr %s63, 4
    %s65 = scalar_lea.vmem %s0, %s64
    %s66 = sadd.s32 0, 0
    %s67 = smul.u32 4, %s66
    %s68 = sadd.s32 0, 0
    %s69 = smul.u32 4, %s68
    %p70 = scmp.lt.s32.totalorder %s69, 3
    %s71 = scalar_select %p70, %s69, 3
    %s72 = smul.addr %s71, 8
    %s73 = scalar_lea.vmem %s2, %s72
    %s74 = sadd.s32 0, 0
    %s75 = smul.u32 4, %s74
    %s76 = sadd.s32 0, 0
    %s77 = smul.u32 4, %s76
    %p78 = scmp.lt.s32.totalorder %s77, 3
    %s79 = scalar_select %p78, %s77, 3
    %s80 = smul.addr %s79, 8
    %s81 = scalar_lea.vmem %s3, %s80
    %s82 = sadd.s32 0, 0
    %s83 = smul.u32 4, %s82
    %p85 = scmp.eq.s32.totalorder 0, 0
    %p86 = scmp.eq.s32.totalorder 0, 0
    %p87 = pnand %p85, %p86
    %p88 = pneg %p87
    // Predicated region
    $region18: #{tpu_custom_call.1} parent=1 // pred_check
      _
    $region19: #{tpu_custom_call.1} parent=1 // pred_check_branch
      %90 = sbr.rel (%p87) target = $region21
    $region20: #{tpu_custom_call.1} parent=1 // pred_region
      %vm91 = vcmask 7168
      %92 = vst.msk [vmem:[#allocation2] sm:$0xff] %vm91, 0.0
      %93 = vst.msk [vmem:[#allocation2 + $0x8] sm:$0xff] %vm91, 0.0
      %94 = vst.msk [vmem:[#allocation2 + $0x10] sm:$0xff] %vm91, 0.0
      %95 = vst.msk [vmem:[#allocation2 + $0x18] sm:$0xff] %vm91, 0.0
      %96 = vst.msk [vmem:[#allocation3] sm:$0xff] %vm91, 0.0
      %97 = vst.msk [vmem:[#allocation3 + $0x8] sm:$0xff] %vm91, 0.0
      %98 = vst.msk [vmem:[#allocation3 + $0x10] sm:$0xff] %vm91, 0.0
      %99 = vst.msk [vmem:[#allocation3 + $0x18] sm:$0xff] %vm91, 0.0
    $region21: #{tpu_custom_call.1} parent=1 // pred_fallthru
      _
    // Predicated region
    $region22: #{tpu_custom_call.1} parent=1 // pred_check
      %p100 = pneg %p86
    $region23: #{tpu_custom_call.1} parent=1 // pred_check_branch
      %102 = sbr.rel (%p100) target = $region25
    $region24: #{tpu_custom_call.1} parent=1 // pred_region
      %vm103 = vcmask 7168
      %104 = vst.msk [vmem:[#allocation4] sm:$0xff] %vm103, -inf
      %105 = vst.msk [vmem:[#allocation4 + $0x8] sm:$0xff] %vm103, -inf
      %106 = vst.msk [vmem:[#allocation4 + $0x10] sm:$0xff] %vm103, -inf
      %107 = vst.msk [vmem:[#allocation4 + $0x18] sm:$0xff] %vm103, -inf
      %108 = vst.msk [vmem:[#allocation5] sm:$0xff] %vm103, 0.0
      %109 = vst.msk [vmem:[#allocation5 + $0x8] sm:$0xff] %vm103, 0.0
      %110 = vst.msk [vmem:[#allocation5 + $0x10] sm:$0xff] %vm103, 0.0
      %111 = vst.msk [vmem:[#allocation5 + $0x18] sm:$0xff] %vm103, 0.0
      %112 = vst.msk [vmem:[#allocation6] sm:$0xff] %vm103, 0.0
      %113 = vst.msk [vmem:[#allocation6 + $0x8] sm:$0xff] %vm103, 0.0
      %114 = vst.msk [vmem:[#allocation6 + $0x10] sm:$0xff] %vm103, 0.0
      %115 = vst.msk [vmem:[#allocation6 + $0x18] sm:$0xff] %vm103, 0.0
    $region25: #{tpu_custom_call.1} parent=1 // pred_fallthru
      _
    %v116 = vld [vmem:[%s65] sm:$0xf]
    %v117 = vld [vmem:[%s65 + $0x4] sm:$0xf]
    %v118 = vld [vmem:[%s65 + $0x8] sm:$0xf]
    %v119 = vld [vmem:[%s65 + $0xc] sm:$0xf]
    %v120 = vld [vmem:[%s1] sm:$0xf]
    %v121 = vld [vmem:[%s1 + $0x4] sm:$0xf]
    %v122 = vld [vmem:[%s1 + $0x8] sm:$0xf]
    %v123 = vld [vmem:[%s1 + $0xc] sm:$0xf]
    %v128 = vunpack.c.l.b16 %v116
    %v129 = vunpack.c.l.b16 %v117
    %v130 = vunpack.c.l.b16 %v118
    %v131 = vunpack.c.l.b16 %v119
    %v132 = vpack.c.b16 %v129, %v128
    %v133 = vpack.c.b16 %v131, %v130
    %v138 = vunpack.c.l.b16 %v120
    %v139 = vunpack.c.l.b16 %v121
    %v140 = vunpack.c.l.b16 %v122
    %v141 = vunpack.c.l.b16 %v123
    %v142 = vpack.c.b16 %v139, %v138
    %v143 = vpack.c.b16 %v141, %v140
    %vm146 = vcmask 261120
    %v148 = vsel %vm146, %v132, 0
    %v151 = vsel %vm146, %v133, 0
    %153 = vmatprep.subr.bf16.mxu0 0
    %154 = vmatpush1.bf16.msra.mxu0 0
    %155 = vmatprep.subr.bf16.mxu0 0
    %156 = vmatpush1.bf16.msra.mxu0 0
    %157 = vmatprep.subr.bf16.mxu0 0
    %158 = vmatpush1.bf16.msra.mxu0 0
    %159 = vmatprep.subr.bf16.mxu0 0
    %160 = vmatpush1.bf16.msra.mxu0 0
    %161 = vmatprep.subr.bf16.mxu0 0
    %162 = vmatpush1.bf16.msra.mxu0 0
    %163 = vmatprep.subr.bf16.mxu0 0
    %164 = vmatpush1.bf16.msra.mxu0 0
    %165 = vmatprep.subr.bf16.mxu0 0
    %166 = vmatpush1.bf16.msra.mxu0 %v143
    %167 = vmatprep.subr.bf16.mxu0 0
    %168 = vmatpush1.bf16.msra.mxu0 %v142
    %169 = vmatprep.subr.bf16.mxu0 0
    %170 = vmatpush2.bf16.msra.mxu0 0
    %171 = vmatprep.subr.bf16.mxu0 0
    %172 = vmatpush2.bf16.msra.mxu0 0
    %173 = vmatprep.subr.bf16.mxu0 0
    %174 = vmatpush2.bf16.msra.mxu0 0
    %175 = vmatprep.subr.bf16.mxu0 0
    %176 = vmatpush2.bf16.msra.mxu0 0
    %177 = vmatprep.subr.bf16.mxu0 0
    %178 = vmatpush2.bf16.msra.mxu0 0
    %179 = vmatprep.subr.bf16.mxu0 0
    %180 = vmatpush2.bf16.msra.mxu0 0
    %181 = vmatprep.subr.bf16.mxu0 0
    %182 = vmatpush2.bf16.msra.mxu0 0
    %183 = vmatprep.subr.bf16.mxu0 0
    %184 = vmatpush2.bf16.msra.mxu0 0
    %185 = vmatprep.mubr.bf16.mxu0 0
    %186 = vmatmul.mubr.bf16.gmra.mxu0 %v148
    %v187 = vpop.f32.mrf.mxu0
    %v188 = vadd.f32 0.0, %v187
    %v189 = vpop.f32.mrf.mxu0
    %v190 = vpop.f32.mrf.mxu0
    %v191 = vadd.f32 0.0, %v190
    %v192 = vpop.f32.mrf.mxu0
    %193 = vmatprep.mubr.bf16.mxu0 0
    %194 = vmatmul.mubr.bf16.gmra.mxu0 %v151
    %v195 = vpop.f32.mrf.mxu0
    %v196 = vadd.f32 0.0, %v195
    %v197 = vpop.f32.mrf.mxu0
    %v198 = vpop.f32.mrf.mxu0
    %v199 = vadd.f32 0.0, %v198
    %v200 = vpop.f32.mrf.mxu0
    %201 = vdwg.mxu0
    %v202 = vlaneseq
    %v203 = vand.u32 %v202, 127
    %v204 = vld [vmem:[%s73] sm:$0xff]
    %v205 = vld [vmem:[%s73 + $0x8] sm:$0xff]
    %v206 = vld [vmem:[%s73 + $0x10] sm:$0xff]
    %v207 = vld [vmem:[%s73 + $0x18] sm:$0xff]
    %s208 = smul.u32 0, 128
    %v209 = vstv %s208
    %v210 = vsub.s32 %v204, %v209
    %v211 = vsub.s32 %v205, %v209
    %v212 = vsub.s32 %v206, %v209
    %v213 = vsub.s32 %v207, %v209
    %v214 = vld [vmem:[#allocation6] sm:$0xff]
    %v215 = vld [vmem:[#allocation6 + $0x8] sm:$0xff]
    %v216 = vld [vmem:[#allocation6 + $0x10] sm:$0xff]
    %v217 = vld [vmem:[#allocation6 + $0x18] sm:$0xff]
    %218 = vset.pattern.permute.xlu0 0
    %219 = vperm.xlu0 %218, %v210
    %v220 = vpop.permute.xlu0 %219
    %221 = vset.pattern.permute.xlu0 0
    %222 = vperm.xlu0 %221, %v211
    %v223 = vpop.permute.xlu0 %222
    %224 = vset.pattern.permute.xlu0 0
    %225 = vperm.xlu0 %224, %v212
    %v226 = vpop.permute.xlu0 %225
    %227 = vset.pattern.permute.xlu0 0
    %228 = vperm.xlu0 %227, %v213
    %v229 = vpop.permute.xlu0 %228
    %vm230 = vcmp.eq.s32.totalorder %v203, %v220
    %vm231 = vcmp.eq.s32.totalorder %v203, %v223
    %vm232 = vcmp.eq.s32.totalorder %v203, %v226
    %vm233 = vcmp.eq.s32.totalorder %v203, %v229
    %v234 = vsel %vm230, %v188, 0.0
    %v235 = vsel %vm231, %v191, 0.0
    %v236 = vsel %vm232, %v196, 0.0
    %v237 = vsel %vm233, %v199, 0.0
    %238 = vadd.xlane.f32.xlu0 %v234
    %v239 = vpop.xlane.xlu0 %238
    %240 = vadd.xlane.f32.xlu0 %v235
    %v241 = vpop.xlane.xlu0 %240
    %242 = vadd.xlane.f32.xlu0 %v236
    %v243 = vpop.xlane.xlu0 %242
    %244 = vadd.xlane.f32.xlu0 %v237
    %v245 = vpop.xlane.xlu0 %244
    %v246 = vadd.f32 %v214, %v239
    %v247 = vadd.f32 %v215, %v241
    %v248 = vadd.f32 %v216, %v243
    %v249 = vadd.f32 %v217, %v245
    %vm250 = vcmask 7168
    %251 = vst.msk [vmem:[#allocation6] sm:$0xff] %vm250, %v246
    %252 = vst.msk [vmem:[#allocation6 + $0x8] sm:$0xff] %vm250, %v247
    %253 = vst.msk [vmem:[#allocation6 + $0x10] sm:$0xff] %vm250, %v248
    %254 = vst.msk [vmem:[#allocation6 + $0x18] sm:$0xff] %vm250, %v249
    %v255 = vld [vmem:[#allocation4] sm:$0xff]
    %v256 = vld [vmem:[#allocation4 + $0x8] sm:$0xff]
    %v257 = vld [vmem:[#allocation4 + $0x10] sm:$0xff]
    %v258 = vld [vmem:[#allocation4 + $0x18] sm:$0xff]
    %259 = vmax.xlane.f32.xlu0 %v188
    %v260 = vpop.xlane.xlu0 %259
    %261 = vmax.xlane.f32.xlu0 %v191
    %v262 = vpop.xlane.xlu0 %261
    %263 = vmax.xlane.f32.xlu0 %v196
    %v264 = vpop.xlane.xlu0 %263
    %265 = vmax.xlane.f32.xlu0 %v199
    %v266 = vpop.xlane.xlu0 %265
    %v267 = vmax.f32 %v255, %v260
    %v268 = vmax.f32 %v256, %v262
    %v269 = vmax.f32 %v257, %v264
    %v270 = vmax.f32 %v258, %v266
    %272 = vset.pattern.permute.xlu0 0
    %273 = vperm.xlu0 %272, %v267
    %v274 = vpop.permute.xlu0 %273
    %277 = vset.pattern.permute.xlu0 0
    %278 = vperm.xlu0 %277, %v268
    %v279 = vpop.permute.xlu0 %278
    %282 = vset.pattern.permute.xlu0 0
    %283 = vperm.xlu0 %282, %v269
    %v284 = vpop.permute.xlu0 %283
    %287 = vset.pattern.permute.xlu0 0
    %288 = vperm.xlu0 %287, %v270
    %v289 = vpop.permute.xlu0 %288
    %v291 = vsub.f32 %v188, %v274
    %v292 = vsub.f32 %v191, %v279
    %v293 = vsub.f32 %v196, %v284
    %v294 = vsub.f32 %v199, %v289
    %v295 = vmul.f32 %v291, 1.442695
    %v296 = vpow.pop %v295
    %v297 = vmul.f32 %v292, 1.442695
    %v298 = vpow.pop %v297
    %v299 = vmul.f32 %v293, 1.442695
    %v300 = vpow.pop %v299
    %v301 = vmul.f32 %v294, 1.442695
    %v302 = vpow.pop %v301
    %v303 = vld [vmem:[#allocation5] sm:$0xff]
    %v304 = vld [vmem:[#allocation5 + $0x8] sm:$0xff]
    %v305 = vld [vmem:[#allocation5 + $0x10] sm:$0xff]
    %v306 = vld [vmem:[#allocation5 + $0x18] sm:$0xff]
    %v307 = vsub.f32 %v255, %v267
    %v308 = vsub.f32 %v256, %v268
    %v309 = vsub.f32 %v257, %v269
    %v310 = vsub.f32 %v258, %v270
    %v311 = vmul.f32 %v307, 1.442695
    %v312 = vpow.pop %v311
    %v313 = vmul.f32 %v308, 1.442695
    %v314 = vpow.pop %v313
    %v315 = vmul.f32 %v309, 1.442695
    %v316 = vpow.pop %v315
    %v317 = vmul.f32 %v310, 1.442695
    %v318 = vpow.pop %v317
    %v319 = vmul.f32 %v303, %v312
    %v320 = vmul.f32 %v304, %v314
    %v321 = vmul.f32 %v305, %v316
    %v322 = vmul.f32 %v306, %v318
    %323 = vadd.xlane.f32.xlu0 %v296
    %v324 = vpop.xlane.xlu0 %323
    %325 = vadd.xlane.f32.xlu0 %v298
    %v326 = vpop.xlane.xlu0 %325
    %327 = vadd.xlane.f32.xlu0 %v300
    %v328 = vpop.xlane.xlu0 %327
    %329 = vadd.xlane.f32.xlu0 %v302
    %v330 = vpop.xlane.xlu0 %329
    %v331 = vadd.f32 %v319, %v324
    %v332 = vadd.f32 %v320, %v326
    %v333 = vadd.f32 %v321, %v328
    %v334 = vadd.f32 %v322, %v330
    %335 = vst.msk [vmem:[#allocation5] sm:$0xff] %vm250, %v331
    %336 = vst.msk [vmem:[#allocation5 + $0x8] sm:$0xff] %vm250, %v332
    %337 = vst.msk [vmem:[#allocation5 + $0x10] sm:$0xff] %vm250, %v333
    %338 = vst.msk [vmem:[#allocation5 + $0x18] sm:$0xff] %vm250, %v334
    %339 = vst.msk [vmem:[#allocation4] sm:$0xff] %vm250, %v267
    %340 = vst.msk [vmem:[#allocation4 + $0x8] sm:$0xff] %vm250, %v268
    %341 = vst.msk [vmem:[#allocation4 + $0x10] sm:$0xff] %vm250, %v269
    %342 = vst.msk [vmem:[#allocation4 + $0x18] sm:$0xff] %vm250, %v270
    // Predicated region
    $region26: #{tpu_custom_call.1} parent=1 // pred_check
      %p343 = pneg %p86
    $region27: #{tpu_custom_call.1} parent=1 // pred_check_branch
      %345 = sbr.rel (%p343) target = $region29
    $region28: #{tpu_custom_call.1} parent=1 // pred_region
      %v346 = vld [vmem:[#allocation4] sm:$0xff]
      %v347 = vld [vmem:[#allocation4 + $0x8] sm:$0xff]
      %v348 = vld [vmem:[#allocation4 + $0x10] sm:$0xff]
      %v349 = vld [vmem:[#allocation4 + $0x18] sm:$0xff]
      %v350 = vld [vmem:[#allocation5] sm:$0xff]
      %v351 = vld [vmem:[#allocation5 + $0x8] sm:$0xff]
      %v352 = vld [vmem:[#allocation5 + $0x10] sm:$0xff]
      %v353 = vld [vmem:[#allocation5 + $0x18] sm:$0xff]
      %v354 = vlog2.pop %v350
      %v355 = vmul.f32 %v354, 0.6931472
      %v356 = vlog2.pop %v351
      %v357 = vmul.f32 %v356, 0.6931472
      %v358 = vlog2.pop %v352
      %v359 = vmul.f32 %v358, 0.6931472
      %v360 = vlog2.pop %v353
      %v361 = vmul.f32 %v360, 0.6931472
      %v362 = vadd.f32 %v346, %v355
      %v363 = vadd.f32 %v347, %v357
      %v364 = vadd.f32 %v348, %v359
      %v365 = vadd.f32 %v349, %v361
      %v366 = vld [vmem:[%s81] sm:$0xff]
      %v367 = vld [vmem:[%s81 + $0x8] sm:$0xff]
      %v368 = vld [vmem:[%s81 + $0x10] sm:$0xff]
      %v369 = vld [vmem:[%s81 + $0x18] sm:$0xff]
      %v370 = vld [vmem:[#allocation2] sm:$0xff]
      %v371 = vld [vmem:[#allocation2 + $0x8] sm:$0xff]
      %v372 = vld [vmem:[#allocation2 + $0x10] sm:$0xff]
      %v373 = vld [vmem:[#allocation2 + $0x18] sm:$0xff]
      %v374 = vld [vmem:[#allocation6] sm:$0xff]
      %v375 = vld [vmem:[#allocation6 + $0x8] sm:$0xff]
      %v376 = vld [vmem:[#allocation6 + $0x10] sm:$0xff]
      %v377 = vld [vmem:[#allocation6 + $0x18] sm:$0xff]
      %v378 = vsub.f32 %v362, %v374
      %v379 = vsub.f32 %v363, %v375
      %v380 = vsub.f32 %v364, %v376
      %v381 = vsub.f32 %v365, %v377
      %v382 = vmul.f32 %v378, %v366
      %v383 = vmul.f32 %v379, %v367
      %v384 = vmul.f32 %v380, %v368
      %v385 = vmul.f32 %v381, %v369
      %v386 = vadd.f32 %v370, %v382
      %v387 = vadd.f32 %v371, %v383
      %v388 = vadd.f32 %v372, %v384
      %v389 = vadd.f32 %v373, %v385
      %390 = vst.msk [vmem:[#allocation2] sm:$0xff] %vm250, %v386
      %391 = vst.msk [vmem:[#allocation2 + $0x8] sm:$0xff] %vm250, %v387
      %392 = vst.msk [vmem:[#allocation2 + $0x10] sm:$0xff] %vm250, %v388
      %393 = vst.msk [vmem:[#allocation2 + $0x18] sm:$0xff] %vm250, %v389
      %v394 = vld [vmem:[#allocation3] sm:$0xff]
      %v395 = vld [vmem:[#allocation3 + $0x8] sm:$0xff]
      %v396 = vld [vmem:[#allocation3 + $0x10] sm:$0xff]
      %v397 = vld [vmem:[#allocation3 + $0x18] sm:$0xff]
      %v398 = vadd.f32 %v394, %v366
      %v399 = vadd.f32 %v395, %v367
      %v400 = vadd.f32 %v396, %v368
      %v401 = vadd.f32 %v397, %v369
      %402 = vst.msk [vmem:[#allocation3] sm:$0xff] %vm250, %v398
      %403 = vst.msk [vmem:[#allocation3 + $0x8] sm:$0xff] %vm250, %v399
      %404 = vst.msk [vmem:[#allocation3 + $0x10] sm:$0xff] %vm250, %v400
      %405 = vst.msk [vmem:[#allocation3 + $0x18] sm:$0xff] %vm250, %v401
    $region29: #{tpu_custom_call.1} parent=1 // pred_fallthru
      _
    // Predicated region
    $region30: #{tpu_custom_call.1} parent=1 // pred_check
      _
    $region31: #{tpu_custom_call.1} parent=1 // pred_check_branch
      %407 = sbr.rel (%p87) target = $region33
    $region32: #{tpu_custom_call.1} parent=1 // pred_region
      %v408 = vld [vmem:[#allocation2] sm:$0xff]
      %v409 = vld [vmem:[#allocation2 + $0x8] sm:$0xff]
      %v410 = vld [vmem:[#allocation2 + $0x10] sm:$0xff]
      %v411 = vld [vmem:[#allocation2 + $0x18] sm:$0xff]
      %v412 = vsel %vm250, %v408, 0.0
      %v413 = vsel %vm250, %v409, 0.0
      %v414 = vadd.f32 %v412, %v413
      %v415 = vsel %vm250, %v410, 0.0
      %v416 = vadd.f32 %v414, %v415
      %v417 = vsel %vm250, %v411, 0.0
      %v418 = vadd.f32 %v416, %v417
      %419 = vadd.xlane.f32.xlu0 %v418
      %v420 = vpop.xlane.xlu0 %419
      %v421 = vrot.slane %v420, 4
      %v422 = vadd.f32 %v420, %v421
      %v423 = vrot.slane %v422, 2
      %v424 = vadd.f32 %v422, %v423
      %v425 = vrot.slane %v424, 1
      %v426 = vadd.f32 %v424, %v425
      %s427 = vtos %v426
      %v428 = vld [vmem:[#allocation3] sm:$0xff]
      %v429 = vld [vmem:[#allocation3 + $0x8] sm:$0xff]
      %v430 = vld [vmem:[#allocation3 + $0x10] sm:$0xff]
      %v431 = vld [vmem:[#allocation3 + $0x18] sm:$0xff]
      %v432 = vsel %vm250, %v428, 0.0
      %v433 = vsel %vm250, %v429, 0.0
      %v434 = vadd.f32 %v432, %v433
      %v435 = vsel %vm250, %v430, 0.0
      %v436 = vadd.f32 %v434, %v435
      %v437 = vsel %vm250, %v431, 0.0
      %v438 = vadd.f32 %v436, %v437
      %439 = vadd.xlane.f32.xlu0 %v438
      %v440 = vpop.xlane.xlu0 %439
      %v441 = vrot.slane %v440, 4
      %v442 = vadd.f32 %v440, %v441
      %v443 = vrot.slane %v442, 2
      %v444 = vadd.f32 %v442, %v443
      %v445 = vrot.slane %v444, 1
      %v446 = vadd.f32 %v444, %v445
      %s447 = vtos %v446
      %v448 = vlaneseq
      %v449 = vshrl.u32 %v448, 7
      %vm450 = vcmp.eq.s32.totalorder %v449, 0
      %vm451 = vcmp.eq.s32.totalorder %v449, 1
      %v452 = vstv %s447
      %v453 = vsel %vm451, %v452, 0.0
      %v454 = vstv %s427
      %v455 = vsel %vm450, %v454, %v453
      %456 = vst [vmem:[#allocation7] sm:$0xff] %v455
    $region33: #{tpu_custom_call.1} parent=1 // pred_fallthru
      _
    // Predicated region
    $region34: #{tpu_custom_call.1} parent=1 // pred_check
      _
    $region35: #{tpu_custom_call.1} parent=1 // pred_check_branch
      %458 = sbr.rel (0) target = $region37
    $region36: #{tpu_custom_call.1} parent=1 // pred_region
      %s460 = ssub.s32 128, 128
      %461 = vsyncadd [#allocation8], %s460
      %s463 = sshll.u32 [#allocation7], 4
      %s464 = int_to_ptr.vmem [resolvable:$true] %s463
      %466 = dma.vmem_to_hbm [thread:$0]  %s464, 128, %s4, [#allocation8]
    $region37: #{tpu_custom_call.1} parent=1 // pred_fallthru
      _
    // Predicated region
    $region38: #{tpu_custom_call.1} parent=1 // pred_check
      _
    $region39: #{tpu_custom_call.1} parent=1 // pred_check_branch
      %468 = sbr.rel (0) target = $region41
    $region40: #{tpu_custom_call.1} parent=1 // pred_region
      %469 = dma.done [#allocation8], 128
    $region41: #{tpu_custom_call.1} parent=1 // pred_fallthru
      _
    %470 = vsyncpa [#allocation8], 1

</llo_original>
